<compile_context>
chip_gen: v7x
topology: tpu7x:2x2x1
jax: 0.10.0
libtpu: 0.0.40
codegen_flags: <defaults>
</compile_context>

<pallas_src>
import functools

import jax
import jax.numpy as jnp
from jax import lax
from jax.experimental import pallas as pl
from jax.experimental.pallas import tpu as pltpu

_LANE = 128
# Contract the last dim of both operands (MXU "trans_b" path): no in-kernel transpose,
# result lands lane-dense along the rhs leading dim.
_CONTRACT_LAST = (((1,), (1,)), ((), ()))
_HI = lax.Precision.HIGHEST


def _round_up(x, m):
    return ((x + m - 1) // m) * m


def _pick_b_tile(B):
    for cand in (128, 64, 32, 16, 8):
        if B % cand == 0:
            return cand
    return B


def _pick_s_tile(S_pad):
    # S_pad is a multiple of 128; keys tiles of 512-1024 rows reach ~85% of HBM roofline.
    for cand in (1024, 512, 256, 128):
        if S_pad % cand == 0:
            return cand
    return S_pad


# ----------------------------- kernels ---------------------------------------
# Grid = (B // bt, S_pad // ts).  Axis 0 ("parallel"): query-batch tiles.  Axis 1
# ("arbitrary"): streamed keys tiles.  The output block (bt, S_pad) is resident across
# the S axis: during the loop it holds raw scores; the last S tile masks padding,
# exponentiates and normalizes with an exact divide.

def _store_scores(o_ref, e, si, tile_s):
    start = pl.multiple_of(si * tile_s, tile_s)
    o_ref[:, pl.ds(start, tile_s)] = e


def _finalize(o_ref, m_ref, s_valid):
    scores = o_ref[...]                                            # (bt, S_pad) raw scores
    col = lax.broadcasted_iota(jnp.int32, scores.shape, 1)
    scores = jnp.where(col < s_valid, scores, -jnp.inf)            # mask S padding
    p = jnp.exp(scores - m_ref[...])
    denom = jnp.sum(p, axis=1, keepdims=True)
    o_ref[...] = p / denom                 # exact divide (runs once) -> exact softmax


def _dot_kernel(q_ref, k_ref, o_ref, m_ref, *, tile_s, s_valid):
    si = pl.program_id(1)

    @pl.when(si == 0)
    def _init():
        m_ref[...] = jnp.full_like(m_ref, -jnp.inf)

    # e = q @ K_tile^T : one MXU matmul, lane-major along S.
    e = lax.dot_general(q_ref[...], k_ref[...], _CONTRACT_LAST,
                        preferred_element_type=jnp.float32)        # (bt, ts)
    m_ref[...] = jnp.maximum(m_ref[...], jnp.max(e, axis=1, keepdims=True))
    _store_scores(o_ref, e, si, tile_s)

    @pl.when(si == pl.num_programs(1) - 1)
    def _fin():
        _finalize(o_ref, m_ref, s_valid)


def _general_kernel(q_ref, k_ref, w_ref, o_ref, m_ref, qw_ref, *, tile_s, s_valid):
    # score_s = q . (W k_s + b) = (q @ W) . k_s + q.b ; q.b is constant over S and
    # cancels in the softmax, so the bias is dropped.  q @ W computed once at tile 0.
    si = pl.program_id(1)

    @pl.when(si == 0)
    def _init():
        m_ref[...] = jnp.full_like(m_ref, -jnp.inf)
        qw_ref[...] = jnp.dot(q_ref[...], w_ref[...],
                              preferred_element_type=jnp.float32).astype(qw_ref.dtype)

    e = lax.dot_general(qw_ref[...], k_ref[...], _CONTRACT_LAST,
                        preferred_element_type=jnp.float32)        # (bt, ts)
    m_ref[...] = jnp.maximum(m_ref[...], jnp.max(e, axis=1, keepdims=True))
    _store_scores(o_ref, e, si, tile_s)

    @pl.when(si == pl.num_programs(1) - 1)
    def _fin():
        _finalize(o_ref, m_ref, s_valid)


def _concat_kernel(q_ref, k_ref, wq_ref, wk_ref, b_ref, v_ref, o_ref,
                   m_ref, qb_ref, *, tile_s, s_valid):
    # tanh([q, k_s] @ W^T + b) == tanh(q @ Wq^T + b + k_s @ Wk^T); query projection and
    # bias are folded once at tile 0; only the key projection runs per tile.
    si = pl.program_id(1)

    @pl.when(si == 0)
    def _init():
        m_ref[...] = jnp.full_like(m_ref, -jnp.inf)
        q_proj = lax.dot_general(q_ref[...], wq_ref[...], _CONTRACT_LAST,
                                 preferred_element_type=jnp.float32)   # (1, H)
        qb_ref[...] = q_proj + b_ref[...]

    k_proj = lax.dot_general(k_ref[...], wk_ref[...], _CONTRACT_LAST,
                             preferred_element_type=jnp.float32)       # (ts, H)
    energy = jnp.tanh(qb_ref[...] + k_proj)                            # (ts, H), f32
    e = lax.dot_general(v_ref[...], energy.astype(v_ref.dtype), _CONTRACT_LAST,
                        preferred_element_type=jnp.float32)            # (1, ts)
    m_ref[...] = jnp.maximum(m_ref[...], jnp.max(e, axis=1, keepdims=True))
    _store_scores(o_ref, e, si, tile_s)

    @pl.when(si == pl.num_programs(1) - 1)
    def _fin():
        _finalize(o_ref, m_ref, s_valid)


# ----------------------------- pallas_call builder ----------------------------

@functools.lru_cache(maxsize=None)
def _build_call(method, B, S, H, S_pad, b_tile, tile_s, kdtype_name):
    kdtype = jnp.dtype(kdtype_name)
    grid = (B // b_tile, S_pad // tile_s)

    def resident(shape):   # small operand, DMA'd once, resident across the whole grid
        return pl.BlockSpec(shape, lambda bi, si: tuple(0 for _ in shape))

    q_spec = pl.BlockSpec((b_tile, H), lambda bi, si: (bi, 0))
    k_spec = pl.BlockSpec((tile_s, H), lambda bi, si: (si, 0))
    o_spec = pl.BlockSpec((b_tile, S_pad), lambda bi, si: (bi, 0))   # resident over S
    m_scratch = pltpu.VMEM((b_tile, 1), jnp.float32)

    if method == 'dot':
        kernel = functools.partial(_dot_kernel, tile_s=tile_s, s_valid=S)
        in_specs = [q_spec, k_spec]
        scratch = [m_scratch]
    elif method == 'general':
        kernel = functools.partial(_general_kernel, tile_s=tile_s, s_valid=S)
        in_specs = [q_spec, k_spec, resident((H, H))]
        scratch = [m_scratch, pltpu.VMEM((b_tile, H), kdtype)]
    else:  # concat
        kernel = functools.partial(_concat_kernel, tile_s=tile_s, s_valid=S)
        in_specs = [q_spec, k_spec, resident((H, H)), resident((H, H)),
                    resident((1, H)), resident((1, H))]
        scratch = [m_scratch, pltpu.VMEM((1, H), jnp.float32)]

    # VMEM budget: double-buffered keys tile + double-buffered resident output slab +
    # small resident operands/scratch.  Cap at 64 MiB (v7x physical VMEM).
    est = (2 * tile_s * H * kdtype.itemsize + 2 * b_tile * S_pad * 4
           + 8 * H * H * 4 + (1 << 20))
    vmem_limit = min(64 * 1024 * 1024, max(32 * 1024 * 1024, 2 * est))

    return pl.pallas_call(
        kernel,
        out_shape=jax.ShapeDtypeStruct((B, S_pad), jnp.float32),
        grid_spec=pltpu.PrefetchScalarGridSpec(
            num_scalar_prefetch=0,
            grid=grid,
            in_specs=in_specs,
            out_specs=o_spec,
            scratch_shapes=scratch),
        compiler_params=pltpu.CompilerParams(
            dimension_semantics=("parallel", "arbitrary"),
            vmem_limit_bytes=vmem_limit),
    )


# ----------------------------- wrappers ----------------------------------------

def prepare_params(method, params, hidden_size, compute_dtype=jnp.float32):
    """One-time host-side param prep: split concat weights, cast MXU operands."""
    cdt = jnp.dtype(compute_dtype)
    if method == 'dot':
        return {}
    if method == 'general':
        return {'attn_w': jnp.asarray(params['attn_w'], cdt)}
    w = jnp.asarray(params['attn_w'])
    return {
        'wq': w[:, :hidden_size].astype(cdt),
        'wk': w[:, hidden_size:].astype(cdt),
        'attn_b': jnp.asarray(params['attn_b'], jnp.float32),   # bias added in f32
        'v': jnp.asarray(params['v'], cdt),
    }


@functools.partial(jax.jit, static_argnums=(0,), static_argnames=('compute_dtype',))
def attn_forward(method, query, keys, params, *, compute_dtype=jnp.float32):
    """Equivalent of Attn(method, hidden_size).forward(query, keys) -> (B, S)."""
    if method not in ('dot', 'general', 'concat'):
        raise ValueError(method, 'is not an appropriate attention method.')
    B, H = query.shape
    S, Hk = keys.shape
    assert Hk == H

    cdt = jnp.dtype(compute_dtype)
    S_pad = _round_up(S, _LANE)        # lane-dense output / aligned score tiles
    tile_s = _pick_s_tile(S_pad)
    b_tile = _pick_b_tile(B)

    q = query.astype(cdt)
    k = keys.astype(cdt)
    if S_pad != S:
        k = jnp.pad(k, ((0, S_pad - S), (0, 0)))   # padded rows are masked in-kernel

    call = _build_call(method, B, S, H, S_pad, b_tile, tile_s, cdt.name)
    if method == 'dot':
        out = call(q, k)
    elif method == 'general':
        out = call(q, k, params['attn_w'].astype(cdt))
    else:
        if B != 1:
            raise NotImplementedError('concat scoring follows the module semantics '
                                      '(single query row).')
        out = call(q, k, params['wq'].astype(cdt), params['wk'].astype(cdt),
                   params['attn_b'], params['v'].astype(cdt))
    return out[:, :S] if S_pad != S else out


# ----------------------------- reference (plain JAX) --------------------------

def attn_reference(method, query, keys, params):
    if method == 'dot':
        e = jnp.sum(query * keys, axis=-1)[None, :]
    elif method == 'general':
        energy = jnp.dot(keys, params['attn_w'].T, precision=_HI) + params['attn_b']
        e = jnp.sum(query * energy, axis=-1)[None, :]
    else:
        S = keys.shape[0]
        cat = jnp.concatenate(
            [jnp.broadcast_to(query, (S, query.shape[1])), keys], -1)
        energy = jnp.tanh(jnp.dot(cat, params['attn_w'].T, precision=_HI)
                          + params['attn_b'])
        e = jnp.sum(params['v'] * energy, axis=-1)[None, :]
    return jax.nn.softmax(e, axis=1)


# ----------------------------- main -------------------------------------------

if __name__ == "__main__":
    H = 32   # hidden_size
    S = 8    # number of keys (sequence length)

    key = jax.random.PRNGKey(0)
    k_q, k_k, k_wg, k_bg, k_wc, k_bc, k_v, k_qb = jax.random.split(key, 8)

    query = jax.random.normal(k_q, (1, H), dtype=jnp.float32)
    keys = jax.random.normal(k_k, (S, H), dtype=jnp.float32)

    lim_g = 1.0 / (H ** 0.5)
    lim_c = 1.0 / ((2 * H) ** 0.5)
    raw_params = {
        'dot': {},
        'general': {
            'attn_w': jax.random.uniform(k_wg, (H, H), jnp.float32, -lim_g, lim_g),
            'attn_b': jax.random.uniform(k_bg, (1, H), jnp.float32, -lim_g, lim_g),
        },
        'concat': {
            'attn_w': jax.random.uniform(k_wc, (H, 2 * H), jnp.float32, -lim_c, lim_c),
            'attn_b': jax.random.uniform(k_bc, (1, H), jnp.float32, -lim_c, lim_c),
            'v': jax.random.uniform(k_v, (1, H), jnp.float32, -0.1, 0.1),
        },
    }

    # --- module-exact path (f32, single query row) ---
    for method in ['dot', 'general', 'concat']:
        prepped = prepare_params(method, raw_params[method], H)
        out = attn_forward(method, query, keys, prepped)
        out = jax.block_until_ready(out)
        ref = attn_reference(method, query, keys, raw_params[method])
        assert out.shape == (1, S), (method, out.shape)
        assert jnp.allclose(out, ref, atol=1e-4, rtol=1e-4), (method, out, ref)
        assert jnp.allclose(jnp.sum(out, axis=1), 1.0, atol=1e-5), method

    # --- batched, bf16-operand path (production decode style) ---
    qb = jax.random.normal(k_qb, (8, H), dtype=jnp.float32)
    out_b = attn_forward('dot', qb, keys, {}, compute_dtype=jnp.bfloat16)
    out_b = jax.block_until_ready(out_b)
    ref_b = jax.nn.softmax(jnp.dot(qb, keys.T, precision=_HI), axis=-1)
    assert out_b.shape == (8, S), out_b.shape
    assert jnp.allclose(out_b, ref_b, atol=5e-2, rtol=5e-2), (out_b, ref_b)
    assert jnp.allclose(jnp.sum(out_b, axis=1), 1.0, atol=1e-4)

    print("KERNEL_OK")
</pallas_src>

<mosaic_0001>
module attributes {stable_mosaic.version = 11 : i64} {
  func.func @_dot_kernel(%arg0: i32, %arg1: i32, %arg2: memref<1x32xf32, #tpu.memory_space<vmem>>, %arg3: memref<128x32xf32, #tpu.memory_space<vmem>>, %arg4: memref<1x128xf32, #tpu.memory_space<vmem>>, %arg5: memref<1x1xf32, #tpu.memory_space<vmem>>) attributes {dimension_semantics = [#tpu.dimension_semantics<parallel>, #tpu.dimension_semantics<arbitrary>], iteration_bounds = array<i64: 1, 1>, scalar_prefetch = 0 : i64, scratch_operands = 1 : i64, tpu.core_type = #tpu.core_type<tc>, window_params = [{transform_indices = @transform_0, window_bounds = array<i64: 1, 32>}, {transform_indices = @transform_1, window_bounds = array<i64: 128, 32>}, {transform_indices = @transform_2, window_bounds = array<i64: 1, 128>}]} {
    %c0_i32 = arith.constant 0 : i32
    %0 = arith.cmpi eq, %arg1, %c0_i32 : i32
    %1 = arith.extui %0 : i1 to i32
    %c0_i32_0 = arith.constant 0 : i32
    %2 = arith.cmpi ne, %1, %c0_i32_0 : i32
    scf.if %2 {
      %cst_12 = arith.constant 0xFF800000 : f32
      %18 = vector.broadcast %cst_12 : f32 to vector<1x1xf32>
      %c0_13 = arith.constant 0 : index
      %c0_14 = arith.constant 0 : index
      %19 = vector.load %arg5[%c0_13, %c0_14] : memref<1x1xf32, #tpu.memory_space<vmem>>, vector<1x1xf32>
      tpu.vector_store %arg5[%c0_13, %c0_14], %18 {strides = array<i32>} : memref<1x1xf32, #tpu.memory_space<vmem>>, vector<1x1xf32>,
    } else {
    }
    %c0 = arith.constant 0 : index
    %c0_1 = arith.constant 0 : index
    %3 = vector.load %arg2[%c0, %c0_1] : memref<1x32xf32, #tpu.memory_space<vmem>>, vector<1x32xf32>
    %c0_2 = arith.constant 0 : index
    %c0_3 = arith.constant 0 : index
    %4 = vector.load %arg3[%c0_2, %c0_3] : memref<128x32xf32, #tpu.memory_space<vmem>>, vector<128x32xf32>
    %cst = arith.constant dense<0.000000e+00> : vector<1x128xf32>
    %5 = tpu.matmul %3, %4, %cst {dimension_numbers = #tpu.dot_dimension_numbers<[1], [1], [0], [0], [0, 0, 1, 0], [], []>} : vector<1x32xf32>, vector<128x32xf32>, vector<1x128xf32> -> vector<1x128xf32>
    %c0_4 = arith.constant 0 : index
    %c0_5 = arith.constant 0 : index
    %6 = vector.load %arg5[%c0_4, %c0_5] : memref<1x1xf32, #tpu.memory_space<vmem>>, vector<1x1xf32>
    %cst_6 = arith.constant dense<0xFF800000> : vector<1xf32>
    %7 = vector.multi_reduction <maximumf>, %5, %cst_6 [1] : vector<1x128xf32> to vector<1xf32>
    %8 = vector.shape_cast %7 : vector<1xf32> to vector<1x1xf32>
    %9 = arith.maximumf %6, %8 : vector<1x1xf32>
    %c0_7 = arith.constant 0 : index
    %c0_8 = arith.constant 0 : index
    %10 = vector.load %arg5[%c0_7, %c0_8] : memref<1x1xf32, #tpu.memory_space<vmem>>, vector<1x1xf32>
    tpu.vector_store %arg5[%c0_7, %c0_8], %9 {strides = array<i32>} : memref<1x1xf32, #tpu.memory_space<vmem>>, vector<1x1xf32>,
    %c128_i32 = arith.constant 128 : i32
    %11 = arith.muli %arg1, %c128_i32 : i32
    %12 = tpu.assume_multiple %11, 128 : i32
    %c0_9 = arith.constant 0 : index
    %13 = arith.index_cast %12 : i32 to index
    %14 = vector.load %arg4[%c0_9, %13] : memref<1x128xf32, #tpu.memory_space<vmem>>, vector<1x128xf32>
    tpu.vector_store %arg4[%c0_9, %13], %5 {strides = array<i32>} : memref<1x128xf32, #tpu.memory_space<vmem>>, vector<1x128xf32>,
    %c0_i32_10 = arith.constant 0 : i32
    %15 = arith.cmpi eq, %arg1, %c0_i32_10 : i32
    %16 = arith.extui %15 : i1 to i32
    %c0_i32_11 = arith.constant 0 : i32
    %17 = arith.cmpi ne, %16, %c0_i32_11 : i32
    scf.if %17 {
      %c0_12 = arith.constant 0 : index
      %c0_13 = arith.constant 0 : index
      %18 = vector.load %arg4[%c0_12, %c0_13] : memref<1x128xf32, #tpu.memory_space<vmem>>, vector<1x128xf32>
      %19 = tpu.iota {dimensions = array<i32: 1>} : vector<1x128xi32>
      %c8_i32 = arith.constant 8 : i32
      %20 = vector.broadcast %c8_i32 : i32 to vector<1x128xi32>
      %21 = arith.cmpi slt, %19, %20 : vector<1x128xi32>
      %cst_14 = arith.constant 0xFF800000 : f32
      %22 = vector.broadcast %cst_14 : f32 to vector<1x128xf32>
      %23 = arith.select %21, %18, %22 : vector<1x128xi1>, vector<1x128xf32>
      %c0_15 = arith.constant 0 : index
      %c0_16 = arith.constant 0 : index
      %24 = vector.load %arg5[%c0_15, %c0_16] : memref<1x1xf32, #tpu.memory_space<vmem>>, vector<1x1xf32>
      %25 = vector.broadcast %24 : vector<1x1xf32> to vector<1x128xf32>
      %26 = arith.subf %23, %25 : vector<1x128xf32>
      %27 = math.exp %26 : vector<1x128xf32>
      %cst_17 = arith.constant dense<0.000000e+00> : vector<1xf32>
      %28 = vector.multi_reduction <add>, %27, %cst_17 [1] : vector<1x128xf32> to vector<1xf32>
      %29 = vector.shape_cast %28 : vector<1xf32> to vector<1x1xf32>
      %30 = vector.broadcast %29 : vector<1x1xf32> to vector<1x128xf32>
      %31 = arith.divf %27, %30 : vector<1x128xf32>
      %c0_18 = arith.constant 0 : index
      %c0_19 = arith.constant 0 : index
      %32 = vector.load %arg4[%c0_18, %c0_19] : memref<1x128xf32, #tpu.memory_space<vmem>>, vector<1x128xf32>
      tpu.vector_store %arg4[%c0_18, %c0_19], %31 {strides = array<i32>} : memref<1x128xf32, #tpu.memory_space<vmem>>, vector<1x128xf32>,
    } else {
    }
    return
  }
  func.func @transform_0(%arg0: i32, %arg1: i32) -> (i32, i32) {
    %c0_i32 = arith.constant 0 : i32
    %c0_i32_0 = arith.constant 0 : i32
    return %arg0, %c0_i32 : i32, i32
  }
  func.func @transform_1(%arg0: i32, %arg1: i32) -> (i32, i32) {
    %c0_i32 = arith.constant 0 : i32
    %c0_i32_0 = arith.constant 0 : i32
    return %arg1, %c0_i32 : i32, i32
  }
  func.func @transform_2(%arg0: i32, %arg1: i32) -> (i32, i32) {
    %c0_i32 = arith.constant 0 : i32
    %c0_i32_0 = arith.constant 0 : i32
    return %arg0, %c0_i32 : i32, i32
  }
}

</mosaic_0001>

<llo_original>
// kernel: attn_forward.1
$region0: #{attn_forward.1}
  #allocation0 [shape = 'u32[]', space=smem, size = 0x4, offset = 0x4, fixed_abs, tag = 'smem constant byte address 0x4 - core index']
  #allocation1 [shape = 'u32[144,128]{1,0:T(1,128)}', space=vmem, size = 0x12000, scoped, tag = 'internal scratch']
  #allocation2 [shape = 'f32[1,1]{1,0:T(1,128)}', space=vmem, size = 0x200, scoped, tag = 'scratch operand']
  %s0 = inlined_call_operand.vmem [shape: f32[1,32], index: 0, kind: input, shape index: {}]
  %s1 = inlined_call_operand.vmem [shape: f32[128,32], index: 1, kind: input, shape index: {}]
  %s2 = inlined_call_operand.hbm [shape: f32[1,128], index: 2, kind: output, shape index: {}]
  %s3 = sld [smem:[#allocation0]]
  $region26: #{attn_forward.1} parent=0
    _
  %s5 = ssub.s32 1, %s3
  %s6 = scalar_select 0, %s5, %s3
  $region1: #{attn_forward.1} parent=0
    #allocation3 [shape = 'u8[512]{0}', space=vmem, size = 0x400, scoped, tag = 'output window, operand 0, single buffered']
    #allocation4 [shape = 's32[1]{0}', space=sflag, size = 0x4, scoped, tag = 'scoped memory for attn_forward.1']
    %7 = vsyncpa [#allocation4], 0
    // Predicated region
    $region2: #{attn_forward.1} parent=1 // pred_check
      _
    $region3: #{attn_forward.1} parent=1 // pred_check_branch
      %9 = sbr.rel (0) target = $region5
    $region4: #{attn_forward.1} parent=1 // pred_region
      _
    $region5: #{attn_forward.1} parent=1 // pred_fallthru
      _
    // Predicated region
    $region6: #{attn_forward.1} parent=1 // pred_check
      _
    $region7: #{attn_forward.1} parent=1 // pred_check_branch
      %11 = sbr.rel (0) target = $region9
    $region8: #{attn_forward.1} parent=1 // pred_region
      _
    $region9: #{attn_forward.1} parent=1 // pred_fallthru
      _
    %p12 = scmp.eq.s32.totalorder 0, 0
    // Predicated region
    $region10: #{attn_forward.1} parent=1 // pred_check
      %p13 = pneg %p12
    $region11: #{attn_forward.1} parent=1 // pred_check_branch
      %15 = sbr.rel (%p13) target = $region13
    $region12: #{attn_forward.1} parent=1 // pred_region
      %vm16 = vcmask 0
      %17 = vst.msk [vmem:[#allocation2] sm:$0x1] %vm16, -inf
    $region13: #{attn_forward.1} parent=1 // pred_fallthru
      _
    %v18 = vld [vmem:[%s0] sm:$0x1]
    %v19 = vld [vmem:[%s1] sm:$0xff]
    %v20 = vld [vmem:[%s1 + $0x8] sm:$0xff]
    %v21 = vld [vmem:[%s1 + $0x10] sm:$0xff]
    %v22 = vld [vmem:[%s1 + $0x18] sm:$0xff]
    %v23 = vld [vmem:[%s1 + $0x20] sm:$0xff]
    %v24 = vld [vmem:[%s1 + $0x28] sm:$0xff]
    %v25 = vld [vmem:[%s1 + $0x30] sm:$0xff]
    %v26 = vld [vmem:[%s1 + $0x38] sm:$0xff]
    %v27 = vld [vmem:[%s1 + $0x40] sm:$0xff]
    %v28 = vld [vmem:[%s1 + $0x48] sm:$0xff]
    %v29 = vld [vmem:[%s1 + $0x50] sm:$0xff]
    %v30 = vld [vmem:[%s1 + $0x58] sm:$0xff]
    %v31 = vld [vmem:[%s1 + $0x60] sm:$0xff]
    %v32 = vld [vmem:[%s1 + $0x68] sm:$0xff]
    %v33 = vld [vmem:[%s1 + $0x70] sm:$0xff]
    %v34 = vld [vmem:[%s1 + $0x78] sm:$0xff]
    %vm35 = vcmask 261120
    %v37 = vsel %vm35, %v18, 0
    %v40 = vsel %vm35, %v19, 0
    %v43 = vsel %vm35, %v20, 0
    %v46 = vsel %vm35, %v21, 0
    %v49 = vsel %vm35, %v22, 0
    %v52 = vsel %vm35, %v23, 0
    %v55 = vsel %vm35, %v24, 0
    %v58 = vsel %vm35, %v25, 0
    %v61 = vsel %vm35, %v26, 0
    %v64 = vsel %vm35, %v27, 0
    %v67 = vsel %vm35, %v28, 0
    %v70 = vsel %vm35, %v29, 0
    %v73 = vsel %vm35, %v30, 0
    %v76 = vsel %vm35, %v31, 0
    %v79 = vsel %vm35, %v32, 0
    %v82 = vsel %vm35, %v33, 0
    %v85 = vsel %vm35, %v34, 0
    %87 = vmatprep.subr.mxu0 0.0
    %88 = vmatpush1.xpose.msra.mxu0 %v40
    %89 = vmatprep.subr.mxu0 0.0
    %90 = vmatpush1.xpose.msra.mxu0 %v43
    %91 = vmatprep.subr.mxu0 0.0
    %92 = vmatpush1.xpose.msra.mxu0 %v46
    %93 = vmatprep.subr.mxu0 0.0
    %94 = vmatpush1.xpose.msra.mxu0 %v49
    %95 = vmatprep.subr.mxu0 0.0
    %96 = vmatpush1.xpose.msra.mxu0 %v52
    %97 = vmatprep.subr.mxu0 0.0
    %98 = vmatpush1.xpose.msra.mxu0 %v55
    %99 = vmatprep.subr.mxu0 0.0
    %100 = vmatpush1.xpose.msra.mxu0 %v58
    %101 = vmatprep.subr.mxu0 0.0
    %102 = vmatpush1.xpose.msra.mxu0 %v61
    %103 = vmatprep.subr.mxu0 0.0
    %104 = vmatpush1.xpose.msra.mxu0 %v64
    %105 = vmatprep.subr.mxu0 0.0
    %106 = vmatpush1.xpose.msra.mxu0 %v67
    %107 = vmatprep.subr.mxu0 0.0
    %108 = vmatpush1.xpose.msra.mxu0 %v70
    %109 = vmatprep.subr.mxu0 0.0
    %110 = vmatpush1.xpose.msra.mxu0 %v73
    %111 = vmatprep.subr.mxu0 0.0
    %112 = vmatpush1.xpose.msra.mxu0 %v76
    %113 = vmatprep.subr.mxu0 0.0
    %114 = vmatpush1.xpose.msra.mxu0 %v79
    %115 = vmatprep.subr.mxu0 0.0
    %116 = vmatpush1.xpose.msra.mxu0 %v82
    %117 = vmatprep.subr.mxu0 0.0
    %118 = vmatpush1.xpose.msra.mxu0 %v85
    %119 = vmatprep.subr.mxu0 0.0
    %120 = vmatpush1.xpose.msra.mxu0 0.0
    %121 = vmatprep.subr.mxu0 0.0
    %122 = vmatpush1.xpose.msra.mxu0 0.0
    %123 = vmatprep.subr.mxu0 0.0
    %124 = vmatpush1.xpose.msra.mxu0 0.0
    %125 = vmatprep.subr.mxu0 0.0
    %126 = vmatpush1.xpose.msra.mxu0 0.0
    %127 = vmatprep.subr.mxu0 0.0
    %128 = vmatpush1.xpose.msra.mxu0 0.0
    %129 = vmatprep.subr.mxu0 0.0
    %130 = vmatpush1.xpose.msra.mxu0 0.0
    %131 = vmatprep.subr.mxu0 0.0
    %132 = vmatpush1.xpose.msra.mxu0 0.0
    %133 = vmatprep.subr.mxu0 0.0
    %134 = vmatpush1.xpose.msra.mxu0 0.0
    %135 = vmatprep.subr.mxu0 0.0
    %136 = vmatpush1.xpose.msra.mxu0 0.0
    %137 = vmatprep.subr.mxu0 0.0
    %138 = vmatpush1.xpose.msra.mxu0 0.0
    %139 = vmatprep.subr.mxu0 0.0
    %140 = vmatpush1.xpose.msra.mxu0 0.0
    %141 = vmatprep.subr.mxu0 0.0
    %142 = vmatpush1.xpose.msra.mxu0 0.0
    %143 = vmatprep.subr.mxu0 0.0
    %144 = vmatpush1.xpose.msra.mxu0 0.0
    %145 = vmatprep.subr.mxu0 0.0
    %146 = vmatpush1.xpose.msra.mxu0 0.0
    %147 = vmatprep.subr.mxu0 0.0
    %148 = vmatpush1.xpose.msra.mxu0 0.0
    %149 = vmatprep.subr.mxu0 0.0
    %150 = vmatpush1.xpose.msra.mxu0 0.0
    %151 = vmatprep.mubr.f32.mxu0 0.0
    %152 = vmatmul.mubr.f32.gmra.mrb[0].mxu0 %v37
    %v153 = vpop.f32.mrb[0].mxu0
    %v154 = vadd.f32 0.0, %v153
    %v155 = vpop.f32.mrb[0].mxu0
    %156 = vdwg.mxu0
    %v157 = vld [vmem:[#allocation2] sm:$0x1]
    %vm158 = vcmask 1040384
    %v159 = vsel %vm158, %v154, -inf
    %160 = vmax.xlane.f32.xlu0 %v159
    %v161 = vpop.xlane.xlu0 %160
    %v162 = vmax.f32 %v157, %v161
    %vm163 = vcmask 0
    %164 = vst.msk [vmem:[#allocation2] sm:$0x1] %vm163, %v162
    %s165 = smul.u32 0, 128
    %s166 = sshra.s32 %s165, 7
    %s167 = sand.u32 %s165, 127
    %s168 = scalar_lea.vmem [#allocation3], %s166
    %169 = vst [vmem:[%s168] sm:$0x1] %v154
    // Predicated region
    $region14: #{attn_forward.1} parent=1 // pred_check
      %p170 = pneg %p12
    $region15: #{attn_forward.1} parent=1 // pred_check_branch
      %172 = sbr.rel (%p170) target = $region17
    $region16: #{attn_forward.1} parent=1 // pred_region
      %v173 = vld [vmem:[#allocation3] sm:$0x1]
      %v174 = vlaneseq
      %v175 = vand.u32 %v174, 127
      %vm176 = vcmp.lt.s32.totalorder %v175, 8
      %v177 = vsel %vm176, %v173, -inf
      %v178 = vld [vmem:[#allocation2] sm:$0x1]
      %180 = vset.pattern.permute.xlu0 0
      %181 = vperm.xlu0 %180, %v178
      %v182 = vpop.permute.xlu0 %181
      %v184 = vlaneseq
      %v185 = vshrl.u32 %v184, 7
      %v186 = vsub.s32 0, %v185
      %v187 = vrot.slane %v182, %v186
      %v188 = vsub.f32 %v177, %v187
      %v189 = vmul.f32 %v188, 1.442695
      %v190 = vpow.pop %v189
      %v191 = vsel %vm158, %v190, 0.0
      %192 = vadd.xlane.f32.xlu0 %v191
      %v193 = vpop.xlane.xlu0 %192
      %v194 = vrcp.pop %v193
      %v195 = vmul.f32 %v190, %v194
      %196 = vst [vmem:[#allocation3] sm:$0x1] %v195
    $region17: #{attn_forward.1} parent=1 // pred_fallthru
      _
    // Predicated region
    $region18: #{attn_forward.1} parent=1 // pred_check
      _
    $region19: #{attn_forward.1} parent=1 // pred_check_branch
      %198 = sbr.rel (0) target = $region21
    $region20: #{attn_forward.1} parent=1 // pred_region
      %s200 = ssub.s32 16, 16
      %201 = vsyncadd [#allocation4], %s200
      %s203 = sshll.u32 [#allocation3], 4
      %s204 = int_to_ptr.vmem [resolvable:$true] %s203
      %206 = dma.vmem_to_hbm [thread:$0]  %s204, 16, %s2, [#allocation4]
    $region21: #{attn_forward.1} parent=1 // pred_fallthru
      _
    // Predicated region
    $region22: #{attn_forward.1} parent=1 // pred_check
      _
    $region23: #{attn_forward.1} parent=1 // pred_check_branch
      %208 = sbr.rel (0) target = $region25
    $region24: #{attn_forward.1} parent=1 // pred_region
      %209 = dma.done [#allocation4], 16
    $region25: #{attn_forward.1} parent=1 // pred_fallthru
      _
    %210 = vsyncpa [#allocation4], 1

</llo_original>
